<compile_context>
chip_gen: v7x
topology: tpu7x:2x2x1
jax: 0.10.0
libtpu: 0.0.40
codegen_flags: <defaults>
</compile_context>

<pallas_src>
import functools

import jax
import jax.numpy as jnp
from jax.experimental import pallas as pl
from jax.experimental.pallas import tpu as pltpu

BN_EPS = 1e-5
LANE = 128            # TPU lane width; hidden/compute tiles padded to this
MAX_BATCH_TILE = 4096  # rows per grid step (sweepable; fits default scoped VMEM)


def _round_up(n, m):
    return -(-n // m) * m


def _model_one_kernel(x_ref, p_ref, o_ref, *, in_dim, pad_dim, out_dim):
    """One batch tile: Linear -> ReLU -> (BN folded) Linear.

    p_ref is the packed bf16 parameter slab:
      rows [0, in_dim)                 : w1  (in_dim x 128, zero-padded cols)
      rows [in_dim, in_dim+pad_dim)    : w2' (BN folded, 128 x 128, zero-padded)
      row  in_dim+pad_dim              : b1
      row  in_dim+pad_dim+1            : b2' (BN folded)
    """
    i0 = in_dim
    i1 = in_dim + pad_dim

    # bf16 operands for the MXU; accumulate in f32.
    x = x_ref[...].astype(jnp.bfloat16)
    h = jnp.dot(x, p_ref[0:i0, :], preferred_element_type=jnp.float32)
    h = h + p_ref[i1:i1 + 1, :].astype(jnp.float32)          # + b1
    h = jnp.maximum(h, 0.0)                                  # ReLU (dropout = identity)

    y = jnp.dot(h.astype(jnp.bfloat16), p_ref[i0:i1, :],
                preferred_element_type=jnp.float32)
    y = y + p_ref[i1 + 1:i1 + 2, :].astype(jnp.float32)      # + b2 (BN folded)

    # 128-wide compute, 32-wide (exact) f32 store.
    o_ref[...] = y[:, :out_dim].astype(o_ref.dtype)


def fold_and_pad_params(p):
    """Fold eval-mode BatchNorm into the output Linear, zero-pad feature dims
    to the 128-lane width, and pack everything into one bf16 slab.
    Runs once, outside the per-call path."""
    w1, b1 = p["w1"], p["b1"]            # (I, H), (1, H)
    w2, b2 = p["w2"], p["b2"]            # (H, O), (1, O)

    s = p["gamma"] * jax.lax.rsqrt(p["running_var"] + BN_EPS)   # (1, H)
    w2f = s.reshape(-1, 1) * w2                                  # (H, O)
    b2f = (p["beta"] - p["running_mean"] * s) @ w2 + b2          # (1, O)

    I, H = w1.shape
    O = w2.shape[1]
    P = max(pl.cdiv(H, LANE), pl.cdiv(O, LANE)) * LANE           # padded width (128)
    rows = _round_up(I + P + 2, 16)                              # bf16 sublane tile

    slab = jnp.zeros((rows, P), jnp.float32)
    slab = slab.at[:I, :H].set(w1)                               # w1
    slab = slab.at[I:I + H, :O].set(w2f)                         # folded w2
    slab = slab.at[I + P, :H].set(b1[0])                         # b1
    slab = slab.at[I + P + 1, :O].set(b2f[0])                    # folded b2
    slab = slab.astype(jnp.bfloat16)

    return {"slab": slab, "in_dim": I, "pad_dim": P, "out_dim": O}


def model_one_forward(x, fp):
    """x: [B, input_size] float32. fp: output of fold_and_pad_params."""
    B = x.shape[0]
    I, P, O = fp["in_dim"], fp["pad_dim"], fp["out_dim"]
    assert x.shape[1] == I

    # Batch tiling: large tiles amortize the ~0.35 us per-grid-step overhead;
    # weights have constant index_maps so they stay VMEM-resident.
    Bp8 = _round_up(B, 8)
    bt = min(MAX_BATCH_TILE, Bp8)
    # v7x has 2 TensorCores; a "parallel" axis only engages both with >= 2
    # grid steps, so split large single-tile batches in two.
    if bt == Bp8 and Bp8 >= 1024:
        bt = _round_up(pl.cdiv(Bp8, 2), 8)
    n_tiles = pl.cdiv(Bp8, bt)
    Bp = n_tiles * bt
    if Bp != B:
        # Only hit for ragged batches (extra rows compute garbage, sliced off).
        x = jnp.pad(x, ((0, Bp - B), (0, 0)))

    kernel = functools.partial(_model_one_kernel, in_dim=I, pad_dim=P, out_dim=O)

    out = pl.pallas_call(
        kernel,
        out_shape=jax.ShapeDtypeStruct((Bp, O), jnp.float32),
        grid=(n_tiles,),
        in_specs=[
            pl.BlockSpec((bt, I), lambda i: (i, 0)),           # x batch tile
            pl.BlockSpec(fp["slab"].shape, lambda i: (0, 0)),  # packed params (resident)
        ],
        out_specs=pl.BlockSpec((bt, O), lambda i: (i, 0)),
        compiler_params=pltpu.CompilerParams(
            dimension_semantics=("parallel",)),
    )(x, fp["slab"])

    return out if Bp == B else out[:B]


def init_params(key, input_size, hidden_size, output_nodes):
    k1, k2, k3, k4, k5, k6, k7, k8 = jax.random.split(key, 8)
    scale1 = 1.0 / jnp.sqrt(input_size)
    scale2 = 1.0 / jnp.sqrt(hidden_size)
    return {
        # Linear 1 (stored as [in, out], i.e. transposed vs. PyTorch [out, in])
        "w1": jax.random.uniform(k1, (input_size, hidden_size), jnp.float32,
                                 -scale1, scale1),
        "b1": jax.random.uniform(k2, (1, hidden_size), jnp.float32, -scale1, scale1),
        # BatchNorm1d affine + running stats (deterministic synthetic values)
        "gamma": jax.random.uniform(k3, (1, hidden_size), jnp.float32, 0.5, 1.5),
        "beta": jax.random.uniform(k4, (1, hidden_size), jnp.float32, -0.5, 0.5),
        "running_mean": jax.random.uniform(k5, (1, hidden_size), jnp.float32, -0.5, 0.5),
        "running_var": jax.random.uniform(k6, (1, hidden_size), jnp.float32, 0.5, 1.5),
        # Linear 2 (output layer)
        "w2": jax.random.uniform(k7, (hidden_size, output_nodes), jnp.float32,
                                 -scale2, scale2),
        "b2": jax.random.uniform(k8, (1, output_nodes), jnp.float32, -scale2, scale2),
    }


def reference_forward_f32(x, p):
    # Pure-JAX reference with un-folded, un-padded f32 parameters.
    h = jnp.maximum(x @ p["w1"] + p["b1"], 0.0)
    y = (h - p["running_mean"]) * jax.lax.rsqrt(p["running_var"] + BN_EPS) \
        * p["gamma"] + p["beta"]
    return y @ p["w2"] + p["b2"]


def reference_forward_bf16(x, fp):
    # Emulates the kernel's bf16-operand / f32-accumulate math exactly
    # (same folded/padded slab), so it admits a tight tolerance.
    I, P, O = fp["in_dim"], fp["pad_dim"], fp["out_dim"]
    slab = fp["slab"].astype(jnp.float32)
    w1, w2 = slab[:I], slab[I:I + P]
    b1, b2 = slab[I + P], slab[I + P + 1]
    xb = x.astype(jnp.bfloat16).astype(jnp.float32)
    h = jnp.maximum(xb @ w1 + b1, 0.0)
    y = h.astype(jnp.bfloat16).astype(jnp.float32) @ w2 + b2
    return y[:, :O]


if __name__ == "__main__":
    INPUT_SIZE = 32
    HIDDEN_SIZE = 64
    OUTPUT_NODES = 32
    BATCH = 8

    key = jax.random.PRNGKey(0)
    kx, kp = jax.random.split(key)
    x = jax.random.normal(kx, (BATCH, INPUT_SIZE), jnp.float32)
    params = init_params(kp, INPUT_SIZE, HIDDEN_SIZE, OUTPUT_NODES)

    folded = fold_and_pad_params(params)          # one-time wrapper-side algebra
    out = model_one_forward(x, folded)
    out = jax.block_until_ready(out)
    assert out.shape == (BATCH, OUTPUT_NODES)

    # Tight check against a bf16-operand emulation of the kernel math.
    ref_bf16 = reference_forward_bf16(x, folded)
    assert jnp.allclose(out, ref_bf16, atol=1e-4, rtol=1e-4), \
        "mismatch vs bf16-emulated reference"

    # Looser check against the exact f32 eval-mode model (bf16 operand error).
    ref_f32 = reference_forward_f32(x, params)
    assert jnp.allclose(out, ref_f32, atol=5e-2, rtol=5e-2), \
        "mismatch vs f32 reference"

    print("KERNEL_OK")
</pallas_src>

<mosaic_0001>
module attributes {stable_mosaic.version = 11 : i64} {
  func.func @_model_one_kernel(%arg0: i32, %arg1: memref<8x32xf32, #tpu.memory_space<vmem>>, %arg2: memref<176x128xbf16, #tpu.memory_space<vmem>>, %arg3: memref<8x32xf32, #tpu.memory_space<vmem>>) attributes {dimension_semantics = [#tpu.dimension_semantics<parallel>], iteration_bounds = array<i64: 1>, scalar_prefetch = 0 : i64, scratch_operands = 0 : i64, tpu.core_type = #tpu.core_type<tc>, window_params = [{transform_indices = @transform_0, window_bounds = array<i64: 8, 32>}, {pipeline_mode = #tpu.pipeline_mode<synchronous>, transform_indices = @transform_1, window_bounds = array<i64: 176, 128>}, {transform_indices = @transform_2, window_bounds = array<i64: 8, 32>}]} {
    %c0 = arith.constant 0 : index
    %c0_0 = arith.constant 0 : index
    %0 = vector.load %arg1[%c0, %c0_0] : memref<8x32xf32, #tpu.memory_space<vmem>>, vector<8x32xf32>
    %1 = arith.truncf %0 : vector<8x32xf32> to vector<8x32xbf16>
    %c0_1 = arith.constant 0 : index
    %c0_2 = arith.constant 0 : index
    %2 = vector.load %arg2[%c0_1, %c0_2] : memref<176x128xbf16, #tpu.memory_space<vmem>>, vector<32x128xbf16>
    %cst = arith.constant dense<0.000000e+00> : vector<8x128xf32>
    %3 = tpu.matmul %1, %2, %cst {dimension_numbers = #tpu.dot_dimension_numbers<[1], [0], [0], [1], [0, 0, 1, 1], [], []>} : vector<8x32xbf16>, vector<32x128xbf16>, vector<8x128xf32> -> vector<8x128xf32>
    %c160 = arith.constant 160 : index
    %c0_3 = arith.constant 0 : index
    %4 = vector.load %arg2[%c160, %c0_3] : memref<176x128xbf16, #tpu.memory_space<vmem>>, vector<1x128xbf16>
    %5 = arith.extf %4 : vector<1x128xbf16> to vector<1x128xf32>
    %6 = vector.broadcast %5 : vector<1x128xf32> to vector<8x128xf32>
    %7 = arith.addf %3, %6 : vector<8x128xf32>
    %cst_4 = arith.constant 0.000000e+00 : f32
    %8 = vector.broadcast %cst_4 : f32 to vector<8x128xf32>
    %9 = arith.maximumf %7, %8 : vector<8x128xf32>
    %10 = arith.truncf %9 : vector<8x128xf32> to vector<8x128xbf16>
    %c32 = arith.constant 32 : index
    %c0_5 = arith.constant 0 : index
    %11 = vector.load %arg2[%c32, %c0_5] : memref<176x128xbf16, #tpu.memory_space<vmem>>, vector<128x128xbf16>
    %cst_6 = arith.constant dense<0.000000e+00> : vector<8x128xf32>
    %12 = tpu.matmul %10, %11, %cst_6 {dimension_numbers = #tpu.dot_dimension_numbers<[1], [0], [0], [1], [0, 0, 1, 1], [], []>} : vector<8x128xbf16>, vector<128x128xbf16>, vector<8x128xf32> -> vector<8x128xf32>
    %c161 = arith.constant 161 : index
    %c0_7 = arith.constant 0 : index
    %13 = vector.load %arg2[%c161, %c0_7] : memref<176x128xbf16, #tpu.memory_space<vmem>>, vector<1x128xbf16>
    %14 = arith.extf %13 : vector<1x128xbf16> to vector<1x128xf32>
    %15 = vector.broadcast %14 : vector<1x128xf32> to vector<8x128xf32>
    %16 = arith.addf %12, %15 : vector<8x128xf32>
    %17 = vector.extract_strided_slice %16 {offsets = [0, 0], sizes = [8, 32], strides = [1, 1]} : vector<8x128xf32> to vector<8x32xf32>
    %c0_8 = arith.constant 0 : index
    %c0_9 = arith.constant 0 : index
    %18 = vector.load %arg3[%c0_8, %c0_9] : memref<8x32xf32, #tpu.memory_space<vmem>>, vector<8x32xf32>
    tpu.vector_store %arg3[%c0_8, %c0_9], %17 {strides = array<i32>} : memref<8x32xf32, #tpu.memory_space<vmem>>, vector<8x32xf32>,
    return
  }
  func.func @transform_0(%arg0: i32) -> (i32, i32) {
    %c0_i32 = arith.constant 0 : i32
    %c0_i32_0 = arith.constant 0 : i32
    return %arg0, %c0_i32 : i32, i32
  }
  func.func @transform_1(%arg0: i32) -> (i32, i32) {
    %c0_i32 = arith.constant 0 : i32
    %c0_i32_0 = arith.constant 0 : i32
    %c0_i32_1 = arith.constant 0 : i32
    return %c0_i32, %c0_i32_0 : i32, i32
  }
  func.func @transform_2(%arg0: i32) -> (i32, i32) {
    %c0_i32 = arith.constant 0 : i32
    %c0_i32_0 = arith.constant 0 : i32
    return %arg0, %c0_i32 : i32, i32
  }
}

</mosaic_0001>

<llo_original>
// kernel: tpu_custom_call.1
$region0: #{tpu_custom_call.1}
  #allocation0 [shape = 'u32[]', space=smem, size = 0x4, offset = 0x4, fixed_abs, tag = 'smem constant byte address 0x4 - core index']
  #allocation1 [shape = 'u32[144,128]{1,0:T(1,128)}', space=vmem, size = 0x12000, scoped, tag = 'internal scratch']
  %s0 = inlined_call_operand.hbm [shape: f32[8,32], index: 0, kind: input, shape index: {}]
  %s1 = inlined_call_operand.hbm [shape: bf16[176,128], index: 1, kind: input, shape index: {}]
  %s2 = inlined_call_operand.hbm [shape: f32[8,32], index: 2, kind: output, shape index: {}]
  %s3 = sld [smem:[#allocation0]]
  $region26: #{tpu_custom_call.1} parent=0
    _
  %s5 = ssub.s32 1, %s3
  %s6 = scalar_select 0, %s5, %s3
  $region1: #{tpu_custom_call.1} parent=0
    #allocation2 [shape = 'u8[4096]{0}', space=vmem, size = 0x1000, scoped, tag = 'input window, operand 0, single buffered']
    #allocation3 [shape = 's32[1]{0}', space=sflag, size = 0x4, scoped, tag = 'scoped memory for tpu_custom_call.1']
    #allocation4 [shape = 's32[1]{0}', space=sflag, size = 0x4, scoped, tag = 'scoped memory for tpu_custom_call.1']
    #allocation5 [shape = 'u8[45056]{0}', space=vmem, size = 0xb000, scoped, tag = 'input window, operand 1, single buffered']
    #allocation6 [shape = 's32[1]{0}', space=sflag, size = 0x4, scoped, tag = 'scoped memory for tpu_custom_call.1']
    #allocation7 [shape = 'u8[4096]{0}', space=vmem, size = 0x1000, scoped, tag = 'output window, operand 0, single buffered']
    %7 = vsyncpa [#allocation3], 0
    %8 = vsyncpa [#allocation6], 0
    %9 = vsyncpa [#allocation4], 0
    // Predicated region
    $region2: #{tpu_custom_call.1} parent=1 // pred_check
      _
    $region3: #{tpu_custom_call.1} parent=1 // pred_check_branch
      %11 = sbr.rel (0) target = $region5
    $region4: #{tpu_custom_call.1} parent=1 // pred_region
      %s13 = ssub.s32 128, 128
      %14 = vsyncadd [#allocation3], %s13
      %s16 = sshll.u32 [#allocation2], 4
      %s17 = int_to_ptr.vmem [resolvable:$true] %s16
      %19 = dma.hbm_to_vmem [thread:$0]  %s0, 128, %s17, [#allocation3]
    $region5: #{tpu_custom_call.1} parent=1 // pred_fallthru
      _
    // Predicated region
    $region6: #{tpu_custom_call.1} parent=1 // pred_check
      _
    $region7: #{tpu_custom_call.1} parent=1 // pred_check_branch
      %21 = sbr.rel (0) target = $region9
    $region8: #{tpu_custom_call.1} parent=1 // pred_region
      %s23 = ssub.s32 1408, 1408
      %24 = vsyncadd [#allocation6], %s23
      %s25 = sshll.u32 [#allocation5], 4
      %s26 = int_to_ptr.vmem [resolvable:$true] %s25
      %31 = dma.hbm_to_vmem [thread:$0]  %s1, 1408, %s26, [#allocation6], 64, 64, 4
    $region9: #{tpu_custom_call.1} parent=1 // pred_fallthru
      _
    // Predicated region
    $region10: #{tpu_custom_call.1} parent=1 // pred_check
      _
    $region11: #{tpu_custom_call.1} parent=1 // pred_check_branch
      %33 = sbr.rel (0) target = $region13
    $region12: #{tpu_custom_call.1} parent=1 // pred_region
      %34 = dma.done [#allocation3], 128
    $region13: #{tpu_custom_call.1} parent=1 // pred_fallthru
      _
    // Predicated region
    $region14: #{tpu_custom_call.1} parent=1 // pred_check
      _
    $region15: #{tpu_custom_call.1} parent=1 // pred_check_branch
      %36 = sbr.rel (0) target = $region17
    $region16: #{tpu_custom_call.1} parent=1 // pred_region
      %37 = dma.done [#allocation6], 1408
    $region17: #{tpu_custom_call.1} parent=1 // pred_fallthru
      _
    %v39 = vld [vmem:[#allocation2] sm:$0xff]
    %v40 = vpack.c.bf16 %v39, %v39
    %v41 = vld [vmem:[#allocation5] sm:$0xf]
    %v42 = vld [vmem:[#allocation5 + $0x4] sm:$0xf]
    %v43 = vld [vmem:[#allocation5 + $0x8] sm:$0xf]
    %v44 = vld [vmem:[#allocation5 + $0xc] sm:$0xf]
    %v45 = vld [vmem:[#allocation5 + $0x50] sm:$0x1]
    %v46 = vunpack.c.l.bf16 %v45
    %v47 = vlaneseq
    %v48 = vshrl.u32 %v47, 7
    %v49 = vsub.s32 0, %v48
    %v50 = vrot.slane %v46, %v49
    %v55 = vunpack.c.l.b16 %v41
    %v56 = vunpack.c.l.b16 %v42
    %v57 = vunpack.c.l.b16 %v43
    %v58 = vunpack.c.l.b16 %v44
    %v59 = vpack.c.b16 %v56, %v55
    %v60 = vpack.c.b16 %v58, %v57
    %vm63 = vcmask 261120
    %v65 = vsel %vm63, %v40, 0
    %67 = vmatprep.subr.bf16.mxu0 0
    %68 = vmatpush1.bf16.msra.mxu0 %v59
    %69 = vmatprep.subr.bf16.mxu0 0
    %70 = vmatpush1.bf16.msra.mxu0 %v60
    %71 = vmatprep.subr.bf16.mxu0 0
    %72 = vmatpush1.bf16.msra.mxu0 0
    %73 = vmatprep.subr.bf16.mxu0 0
    %74 = vmatpush1.bf16.msra.mxu0 0
    %75 = vmatprep.subr.bf16.mxu0 0
    %76 = vmatpush1.bf16.msra.mxu0 0
    %77 = vmatprep.subr.bf16.mxu0 0
    %78 = vmatpush1.bf16.msra.mxu0 0
    %79 = vmatprep.subr.bf16.mxu0 0
    %80 = vmatpush1.bf16.msra.mxu0 0
    %81 = vmatprep.subr.bf16.mxu0 0
    %82 = vmatpush1.bf16.msra.mxu0 0
    %83 = vmatprep.subr.bf16.mxu0 0
    %84 = vmatpush1.bf16.msra.mxu0 0
    %85 = vmatprep.subr.bf16.mxu0 0
    %86 = vmatpush1.bf16.msra.mxu0 0
    %87 = vmatprep.subr.bf16.mxu0 0
    %88 = vmatpush1.bf16.msra.mxu0 0
    %89 = vmatprep.subr.bf16.mxu0 0
    %90 = vmatpush1.bf16.msra.mxu0 0
    %91 = vmatprep.subr.bf16.mxu0 0
    %92 = vmatpush1.bf16.msra.mxu0 0
    %93 = vmatprep.subr.bf16.mxu0 0
    %94 = vmatpush1.bf16.msra.mxu0 0
    %95 = vmatprep.subr.bf16.mxu0 0
    %96 = vmatpush1.bf16.msra.mxu0 0
    %97 = vmatprep.subr.bf16.mxu0 0
    %98 = vmatpush1.bf16.msra.mxu0 0
    %99 = vmatprep.mubr.bf16.mxu0 0
    %100 = vmatmul.mubr.bf16.gmra.mrb[0].mxu0 %v65
    %v101 = vpop.f32.mrb[0].mxu0
    %v102 = vadd.f32 %v50, %v101
    %v103 = vpop.f32.mrb[0].mxu0
    %v104 = vpop.f32.mrb[0].mxu0
    %v105 = vpop.f32.mrb[0].mxu0
    %106 = vdwg.mxu0
    %v107 = vmax.f32 %v102, 0.0
    %v108 = vpack.c.bf16 %v107, %v107
    %v109 = vld [vmem:[#allocation5 + $0x10] sm:$0xf]
    %v110 = vld [vmem:[#allocation5 + $0x14] sm:$0xf]
    %v111 = vld [vmem:[#allocation5 + $0x18] sm:$0xf]
    %v112 = vld [vmem:[#allocation5 + $0x1c] sm:$0xf]
    %v113 = vld [vmem:[#allocation5 + $0x20] sm:$0xf]
    %v114 = vld [vmem:[#allocation5 + $0x24] sm:$0xf]
    %v115 = vld [vmem:[#allocation5 + $0x28] sm:$0xf]
    %v116 = vld [vmem:[#allocation5 + $0x2c] sm:$0xf]
    %v117 = vld [vmem:[#allocation5 + $0x30] sm:$0xf]
    %v118 = vld [vmem:[#allocation5 + $0x34] sm:$0xf]
    %v119 = vld [vmem:[#allocation5 + $0x38] sm:$0xf]
    %v120 = vld [vmem:[#allocation5 + $0x3c] sm:$0xf]
    %v121 = vld [vmem:[#allocation5 + $0x40] sm:$0xf]
    %v122 = vld [vmem:[#allocation5 + $0x44] sm:$0xf]
    %v123 = vld [vmem:[#allocation5 + $0x48] sm:$0xf]
    %v124 = vld [vmem:[#allocation5 + $0x4c] sm:$0xf]
    %v125 = vlaneseq
    %v126 = vshrl.u32 %v125, 7
    %v127 = vsub.s32 1, %v126
    %v128 = vrot.slane %v46, %v127
    %v145 = vunpack.c.l.b16 %v109
    %v146 = vunpack.c.l.b16 %v110
    %v147 = vunpack.c.l.b16 %v111
    %v148 = vunpack.c.l.b16 %v112
    %v149 = vunpack.c.l.b16 %v113
    %v150 = vunpack.c.l.b16 %v114
    %v151 = vunpack.c.l.b16 %v115
    %v152 = vunpack.c.l.b16 %v116
    %v153 = vunpack.c.l.b16 %v117
    %v154 = vunpack.c.l.b16 %v118
    %v155 = vunpack.c.l.b16 %v119
    %v156 = vunpack.c.l.b16 %v120
    %v157 = vunpack.c.l.b16 %v121
    %v158 = vunpack.c.l.b16 %v122
    %v159 = vunpack.c.l.b16 %v123
    %v160 = vunpack.c.l.b16 %v124
    %v161 = vpack.c.b16 %v146, %v145
    %v162 = vpack.c.b16 %v148, %v147
    %v163 = vpack.c.b16 %v150, %v149
    %v164 = vpack.c.b16 %v152, %v151
    %v165 = vpack.c.b16 %v154, %v153
    %v166 = vpack.c.b16 %v156, %v155
    %v167 = vpack.c.b16 %v158, %v157
    %v168 = vpack.c.b16 %v160, %v159
    %177 = vmatprep.subr.bf16.mxu0 0
    %178 = vmatpush1.bf16.msra.mxu0 %v161
    %179 = vmatprep.subr.bf16.mxu0 0
    %180 = vmatpush1.bf16.msra.mxu0 %v162
    %181 = vmatprep.subr.bf16.mxu0 0
    %182 = vmatpush1.bf16.msra.mxu0 %v163
    %183 = vmatprep.subr.bf16.mxu0 0
    %184 = vmatpush1.bf16.msra.mxu0 %v164
    %185 = vmatprep.subr.bf16.mxu0 0
    %186 = vmatpush1.bf16.msra.mxu0 %v165
    %187 = vmatprep.subr.bf16.mxu0 0
    %188 = vmatpush1.bf16.msra.mxu0 %v166
    %189 = vmatprep.subr.bf16.mxu0 0
    %190 = vmatpush1.bf16.msra.mxu0 %v167
    %191 = vmatprep.subr.bf16.mxu0 0
    %192 = vmatpush1.bf16.msra.mxu0 %v168
    %193 = vmatprep.subr.bf16.mxu0 0
    %194 = vmatpush1.bf16.msra.mxu0 0
    %195 = vmatprep.subr.bf16.mxu0 0
    %196 = vmatpush1.bf16.msra.mxu0 0
    %197 = vmatprep.subr.bf16.mxu0 0
    %198 = vmatpush1.bf16.msra.mxu0 0
    %199 = vmatprep.subr.bf16.mxu0 0
    %200 = vmatpush1.bf16.msra.mxu0 0
    %201 = vmatprep.subr.bf16.mxu0 0
    %202 = vmatpush1.bf16.msra.mxu0 0
    %203 = vmatprep.subr.bf16.mxu0 0
    %204 = vmatpush1.bf16.msra.mxu0 0
    %205 = vmatprep.subr.bf16.mxu0 0
    %206 = vmatpush1.bf16.msra.mxu0 0
    %207 = vmatprep.subr.bf16.mxu0 0
    %208 = vmatpush1.bf16.msra.mxu0 0
    %209 = vmatprep.mubr.bf16.mxu0 0
    %210 = vmatmul.mubr.bf16.gmra.mrb[0].mxu0 %v108
    %v211 = vpop.f32.mrb[0].mxu0
    %v212 = vadd.f32 %v128, %v211
    %v213 = vpop.f32.mrb[0].mxu0
    %v214 = vpop.f32.mrb[0].mxu0
    %v215 = vpop.f32.mrb[0].mxu0
    %216 = vdwg.mxu0
    %217 = vst.msk [vmem:[#allocation7] sm:$0xff] %vm63, %v212
    // Predicated region
    $region18: #{tpu_custom_call.1} parent=1 // pred_check
      _
    $region19: #{tpu_custom_call.1} parent=1 // pred_check_branch
      %219 = sbr.rel (0) target = $region21
    $region20: #{tpu_custom_call.1} parent=1 // pred_region
      %s221 = ssub.s32 128, 128
      %222 = vsyncadd [#allocation4], %s221
      %s224 = sshll.u32 [#allocation7], 4
      %s225 = int_to_ptr.vmem [resolvable:$true] %s224
      %227 = dma.vmem_to_hbm [thread:$0]  %s225, 128, %s2, [#allocation4]
    $region21: #{tpu_custom_call.1} parent=1 // pred_fallthru
      _
    // Predicated region
    $region22: #{tpu_custom_call.1} parent=1 // pred_check
      _
    $region23: #{tpu_custom_call.1} parent=1 // pred_check_branch
      %229 = sbr.rel (0) target = $region25
    $region24: #{tpu_custom_call.1} parent=1 // pred_region
      %230 = dma.done [#allocation4], 128
    $region25: #{tpu_custom_call.1} parent=1 // pred_fallthru
      _
    %231 = vsyncpa [#allocation3], 1
    %232 = vsyncpa [#allocation6], 1
    %233 = vsyncpa [#allocation4], 1

</llo_original>
